<compile_context>
chip_gen: v7x
topology: tpu7x:2x2x1
jax: 0.10.0
libtpu: 0.0.40
codegen_flags: <defaults>
</compile_context>

<pallas_src>
import functools

import jax
import jax.numpy as jnp
import numpy as np
from jax import lax
from jax.experimental import pallas as pl
from jax.experimental.pallas import tpu as pltpu


# ----------------------------------------------------------------------------
# Host-side (numpy) weight construction — matches F.grid_sample semantics.
# ----------------------------------------------------------------------------
def _interp_matrix_np(n_out: int, n_in: int) -> np.ndarray:
    """Bilinear interpolation matrix (n_out, n_in) matching
    F.grid_sample(mode='bilinear', padding_mode='zeros', align_corners=False)
    sampled at torch.linspace(-1, 1, n_out)."""
    coords = np.linspace(-1.0, 1.0, n_out, dtype=np.float64)  # n_out==1 -> [-1.]
    # The .clamp(-1, 1) in the PyTorch code is a no-op on this grid.
    pix = ((coords + 1.0) * n_in - 1.0) / 2.0            # align_corners=False map
    i0 = np.floor(pix).astype(np.int64)
    frac = pix - np.floor(pix)
    i1 = i0 + 1
    mat = np.zeros((n_out, n_in), dtype=np.float64)
    rows = np.arange(n_out)
    v0 = (i0 >= 0) & (i0 < n_in)                         # zero padding outside
    v1 = (i1 >= 0) & (i1 < n_in)
    mat[rows[v0], i0[v0]] += 1.0 - frac[v0]
    mat[rows[v1], i1[v1]] += frac[v1]
    return mat.astype(np.float32)


@functools.lru_cache(maxsize=None)
def _kron_weight(mv_h: int, mv_w: int, hf: int, wf: int) -> np.ndarray:
    """Fused resampling weight W[(i*mv_w+j), (h*wf+w)] = Wy[i,h] * Wx[j,w]."""
    wy = _interp_matrix_np(mv_h, hf)
    wx = _interp_matrix_np(mv_w, wf)
    return np.kron(wy, wx).astype(np.float32)


def _check_interp_golden() -> None:
    """Golden values derived from torch F.grid_sample(align_corners=False,
    padding_mode='zeros'): corner sample at x=-1 / x=+1 takes 0.5 * edge."""
    np.testing.assert_allclose(_interp_matrix_np(1, 2), [[0.5, 0.0]], atol=1e-6)
    np.testing.assert_allclose(
        _interp_matrix_np(2, 4),
        [[0.5, 0.0, 0.0, 0.0], [0.0, 0.0, 0.0, 0.5]],
        atol=1e-6,
    )


# ----------------------------------------------------------------------------
# Generation-aware sizing helpers.
# ----------------------------------------------------------------------------
def _vmem_capacity_bytes() -> int:
    try:
        return int(pltpu.get_tpu_info().vmem_capacity_bytes)
    except Exception:  # pragma: no cover — non-TPU / older runtimes
        return 64 * 1024 * 1024


def _pick_k_block(k_total: int, p: int, w_itemsize: int, budget_bytes: int) -> int:
    """K tile for the fused weight: whole K if the weight fits (resident,
    single-buffered); otherwise the largest 128-multiple divisor of K whose
    double-buffered weight slab fits the budget."""
    if p * k_total * w_itemsize <= budget_bytes:
        return k_total
    per_buffer = max(budget_bytes // 2, 1)
    max_k = per_buffer // max(p * w_itemsize, 1)
    best = 0
    for cand in range(128, k_total, 128):
        if k_total % cand == 0 and cand <= max_k:
            best = cand
    if best:
        return best
    for cand in range(128, k_total, 128):   # smallest legal K tile as last resort
        if k_total % cand == 0:
            return cand
    return k_total


def _pick_bc_block(bc: int, row_bytes: int, budget_bytes: int) -> int:
    """B*C tile (sublane axis of the feature/output blocks).

    Prefers the largest divisor of `bc` that is a multiple of 256 (v6e/v7x MXU
    width), else 128, else 8 (sublane quantum), fits the VMEM budget, and
    leaves >= 2 grid steps when possible (v7x megacore sharding of the
    'parallel' BC axis)."""
    max_rows = max(1, budget_bytes // max(row_bytes, 1))
    for quantum in (256, 128, 8):
        cands = [d for d in range(quantum, bc + 1, quantum)
                 if bc % d == 0 and d <= max_rows]
        if cands:
            multi = [d for d in cands if bc // d >= 2]
            return max(multi) if multi else max(cands)
    # TODO(synk): padded/ragged fallback for very large BC not divisible by 8.
    return bc


# ----------------------------------------------------------------------------
# Pallas kernel: (bc_block, k_block) x (P, k_block)^T MXU matmul, f32 accum.
# ----------------------------------------------------------------------------
def _resample_kernel(feat_ref, w_ref, out_ref, acc_ref):
    # feat_ref: (bc_block, k_block)  flattened key features (native dtype)
    # w_ref:    (P, k_block)         fused kron interpolation weight
    # out_ref:  (bc_block, P)        output block (no wrapper transpose needed)
    # acc_ref:  (bc_block, P) f32    accumulator across the K grid axis
    k = pl.program_id(1)

    @pl.when(k == 0)
    def _init():
        acc_ref[...] = jnp.zeros_like(acc_ref)

    acc_ref[...] += lax.dot_general(
        feat_ref[...], w_ref[...],
        dimension_numbers=(((1,), (1,)), ((), ())),      # contract K of both
        preferred_element_type=jnp.float32,
    )

    @pl.when(k == pl.num_programs(1) - 1)
    def _finalize():
        out_ref[...] = acc_ref[...].astype(out_ref.dtype)


# ----------------------------------------------------------------------------
# Wrapper.
# ----------------------------------------------------------------------------
@functools.partial(jax.jit, static_argnames=("stride",))
def apn_forward(img_cur, img_ref, key_feat, stride: int = 16):
    """Pallas implementation of APN.forward (NCHW, matches PyTorch)."""
    del img_ref  # values are discarded by MotionVector; only shapes matter
    B, _, H, W_img = img_cur.shape
    # MotionVector: avg_pool(2,2) halves H,W then divides by stride/2 -> H/stride.
    mv_h, mv_w = H // stride, W_img // stride

    Bf, C, Hf, Wf = key_feat.shape
    P, K, BC = mv_h * mv_w, Hf * Wf, Bf * C

    fdtype = key_feat.dtype
    fsize = fdtype.itemsize

    # Weight in the FEATURE dtype (bf16 features -> native MXU path); f32 accum
    # keeps accuracy. Built once per shape on the host (lru_cache) and folded
    # into the jitted executable as a constant.
    w = jnp.asarray(_kron_weight(mv_h, mv_w, Hf, Wf), dtype=fdtype)  # (P, K)
    feat2d = key_feat.reshape(BC, K)

    # Generation-aware VMEM budgeting (v5e/v6e: 128 MiB, v7x: 64 MiB).
    vmem_capacity = _vmem_capacity_bytes()
    vmem_limit = (vmem_capacity * 3) // 4

    k_block = _pick_k_block(K, P, fsize, vmem_limit // 4)
    num_k = K // k_block
    weight_bytes = P * k_block * fsize * (1 if num_k == 1 else 2)

    # Per-row VMEM cost of one BC row: feature slab (x2 buffers) + output block
    # (x2 buffers) + f32 accumulator scratch.
    row_bytes = 2 * k_block * fsize + 2 * P * fsize + 4 * P
    bc_budget = min(vmem_limit - weight_bytes - (1 << 20), vmem_capacity // 4)
    bc_budget = max(bc_budget, row_bytes)
    bc_block = _pick_bc_block(BC, row_bytes, bc_budget)
    num_bc = BC // bc_block

    # Grid-invariant weight (single K block) -> single-buffer it.
    w_spec_kwargs = {"pipeline_mode": pl.Buffered(1)} if num_k == 1 else {}

    cost = pl.CostEstimate(
        flops=2 * P * K * BC,
        transcendentals=0,
        bytes_accessed=BC * K * fsize + BC * P * fsize + P * K * fsize,
    )

    out2d = pl.pallas_call(
        _resample_kernel,
        out_shape=jax.ShapeDtypeStruct((BC, P), fdtype),
        grid_spec=pltpu.PrefetchScalarGridSpec(
            num_scalar_prefetch=0,
            grid=(num_bc, num_k),
            in_specs=[
                pl.BlockSpec((bc_block, k_block), lambda i, k: (i, k)),
                pl.BlockSpec((P, k_block), lambda i, k: (0, k), **w_spec_kwargs),
            ],
            out_specs=pl.BlockSpec((bc_block, P), lambda i, k: (i, 0)),
            scratch_shapes=[pltpu.VMEM((bc_block, P), jnp.float32)],
        ),
        compiler_params=pltpu.CompilerParams(
            dimension_semantics=("parallel", "arbitrary"),
            vmem_limit_bytes=int(vmem_limit),
        ),
        cost_estimate=cost,
    )(feat2d, w)

    # (BC, P) -> (B, C, mv_h, mv_w): pure metadata reshape, no transpose.
    return out2d.reshape(Bf, C, mv_h, mv_w)


# ----------------------------------------------------------------------------
# Pure-JAX reference (separable form) for validation.
# ----------------------------------------------------------------------------
def _reference(key_feat, mv_h: int, mv_w: int):
    _, _, Hf, Wf = key_feat.shape
    wy = jnp.asarray(_interp_matrix_np(mv_h, Hf))
    wx = jnp.asarray(_interp_matrix_np(mv_w, Wf))
    out = jnp.einsum("ih,bchw,jw->bcij", wy, key_feat.astype(jnp.float32), wx)
    return out.astype(key_feat.dtype)


if __name__ == "__main__":
    _check_interp_golden()

    key = jax.random.PRNGKey(0)
    k1, k2, k3 = jax.random.split(key, 3)

    stride = 16
    # img shapes: (B, 3, 64, 64) -> motion vector / grid is 4x4
    img_cur = jax.random.normal(k1, (2, 3, 64, 64), dtype=jnp.float32)
    img_ref = jax.random.normal(k2, (2, 3, 64, 64), dtype=jnp.float32)
    # key_feat: (B, C, Hf, Wf) feature map that gets bilinearly resampled to 4x4
    key_feat = jax.random.normal(k3, (2, 8, 8, 8), dtype=jnp.float32)

    out = jax.block_until_ready(apn_forward(img_cur, img_ref, key_feat, stride=stride))
    ref = jax.block_until_ready(_reference(key_feat, 64 // stride, 64 // stride))

    np.testing.assert_allclose(np.asarray(out), np.asarray(ref), rtol=1e-5, atol=1e-5)
    assert out.shape == (2, 8, 4, 4)
    print("KERNEL_OK")
</pallas_src>

<mosaic_0001>
module attributes {stable_mosaic.version = 11 : i64} {
  func.func @_resample_kernel(%arg0: i32, %arg1: i32, %arg2: memref<8x64xf32, #tpu.memory_space<vmem>>, %arg3: memref<16x64xf32, #tpu.memory_space<vmem>>, %arg4: memref<8x16xf32, #tpu.memory_space<vmem>>, %arg5: memref<8x16xf32, #tpu.memory_space<vmem>>) attributes {dimension_semantics = [#tpu.dimension_semantics<parallel>, #tpu.dimension_semantics<arbitrary>], iteration_bounds = array<i64: 2, 1>, scalar_prefetch = 0 : i64, scratch_operands = 1 : i64, tpu.core_type = #tpu.core_type<tc>, window_params = [{transform_indices = @transform_0, window_bounds = array<i64: 8, 64>}, {pipeline_mode = #tpu.pipeline_mode<synchronous>, transform_indices = @transform_1, window_bounds = array<i64: 16, 64>}, {transform_indices = @transform_2, window_bounds = array<i64: 8, 16>}]} {
    %c0_i32 = arith.constant 0 : i32
    %0 = arith.cmpi eq, %arg1, %c0_i32 : i32
    %1 = arith.extui %0 : i1 to i32
    %c0_i32_0 = arith.constant 0 : i32
    %2 = arith.cmpi ne, %1, %c0_i32_0 : i32
    scf.if %2 {
      %cst_10 = arith.constant 0.000000e+00 : f32
      %12 = vector.broadcast %cst_10 : f32 to vector<8x16xf32>
      %c0_11 = arith.constant 0 : index
      %c0_12 = arith.constant 0 : index
      %13 = vector.load %arg5[%c0_11, %c0_12] : memref<8x16xf32, #tpu.memory_space<vmem>>, vector<8x16xf32>
      tpu.vector_store %arg5[%c0_11, %c0_12], %12 {strides = array<i32>} : memref<8x16xf32, #tpu.memory_space<vmem>>, vector<8x16xf32>,
    } else {
    }
    %c0 = arith.constant 0 : index
    %c0_1 = arith.constant 0 : index
    %3 = vector.load %arg5[%c0, %c0_1] : memref<8x16xf32, #tpu.memory_space<vmem>>, vector<8x16xf32>
    %c0_2 = arith.constant 0 : index
    %c0_3 = arith.constant 0 : index
    %4 = vector.load %arg2[%c0_2, %c0_3] : memref<8x64xf32, #tpu.memory_space<vmem>>, vector<8x64xf32>
    %c0_4 = arith.constant 0 : index
    %c0_5 = arith.constant 0 : index
    %5 = vector.load %arg3[%c0_4, %c0_5] : memref<16x64xf32, #tpu.memory_space<vmem>>, vector<16x64xf32>
    %cst = arith.constant dense<0.000000e+00> : vector<8x16xf32>
    %6 = tpu.matmul %4, %5, %cst {dimension_numbers = #tpu.dot_dimension_numbers<[1], [1], [0], [0], [0, 0, 1, 0], [], []>} : vector<8x64xf32>, vector<16x64xf32>, vector<8x16xf32> -> vector<8x16xf32>
    %7 = arith.addf %3, %6 : vector<8x16xf32>
    %c0_6 = arith.constant 0 : index
    %c0_7 = arith.constant 0 : index
    %8 = vector.load %arg5[%c0_6, %c0_7] : memref<8x16xf32, #tpu.memory_space<vmem>>, vector<8x16xf32>
    tpu.vector_store %arg5[%c0_6, %c0_7], %7 {strides = array<i32>} : memref<8x16xf32, #tpu.memory_space<vmem>>, vector<8x16xf32>,
    %c0_i32_8 = arith.constant 0 : i32
    %9 = arith.cmpi eq, %arg1, %c0_i32_8 : i32
    %10 = arith.extui %9 : i1 to i32
    %c0_i32_9 = arith.constant 0 : i32
    %11 = arith.cmpi ne, %10, %c0_i32_9 : i32
    scf.if %11 {
      %c0_10 = arith.constant 0 : index
      %c0_11 = arith.constant 0 : index
      %12 = vector.load %arg5[%c0_10, %c0_11] : memref<8x16xf32, #tpu.memory_space<vmem>>, vector<8x16xf32>
      %c0_12 = arith.constant 0 : index
      %c0_13 = arith.constant 0 : index
      %13 = vector.load %arg4[%c0_12, %c0_13] : memref<8x16xf32, #tpu.memory_space<vmem>>, vector<8x16xf32>
      tpu.vector_store %arg4[%c0_12, %c0_13], %12 {strides = array<i32>} : memref<8x16xf32, #tpu.memory_space<vmem>>, vector<8x16xf32>,
    } else {
    }
    return
  }
  func.func @transform_0(%arg0: i32, %arg1: i32) -> (i32, i32) {
    %c0_i32 = arith.constant 0 : i32
    return %arg0, %arg1 : i32, i32
  }
  func.func @transform_1(%arg0: i32, %arg1: i32) -> (i32, i32) {
    %c0_i32 = arith.constant 0 : i32
    %c0_i32_0 = arith.constant 0 : i32
    return %c0_i32, %arg1 : i32, i32
  }
  func.func @transform_2(%arg0: i32, %arg1: i32) -> (i32, i32) {
    %c0_i32 = arith.constant 0 : i32
    %c0_i32_0 = arith.constant 0 : i32
    return %arg0, %c0_i32 : i32, i32
  }
}

</mosaic_0001>

<llo_original>
// kernel: apn_forward.1
$region0: #{apn_forward.1}
  #allocation0 [shape = 'u32[]', space=smem, size = 0x4, offset = 0x4, fixed_abs, tag = 'smem constant byte address 0x4 - core index']
  #allocation1 [shape = 'u32[144,128]{1,0:T(1,128)}', space=vmem, size = 0x12000, scoped, tag = 'internal scratch']
  #allocation2 [shape = 'f32[8,16]{1,0:T(8,128)}', space=vmem, size = 0x1000, scoped, tag = 'scratch operand']
  %s0 = inlined_call_operand.vmem [shape: f32[16,64], index: 0, kind: input, shape index: {}]
  %s1 = inlined_call_operand.vmem [shape: f32[16,64], index: 1, kind: input, shape index: {}]
  %s2 = inlined_call_operand.vmem [shape: f32[16,16], index: 2, kind: output, shape index: {}]
  %s3 = sld [smem:[#allocation0]]
  $region49: #{apn_forward.1} parent=0
    _
  %s5 = ssub.s32 1, %s3
  %s6 = scalar_select 0, %s5, %s3
  loop: start=0, step=1, limit=4
  $region2: #{apn_forward.1} parent=0 // loop_pre_header
    _
  $region3: #{apn_forward.1} parent=0 // loop_header
    %s8 = sphi 0, %s12
    %p9 = scmp.ge.s32.totalorder %s8, 4
    %s15 = sphi 0, %s27
    %s16 = sphi 0, %s23
    %s17 = sphi 0, %s15
    %s18 = sphi 0, %s16
    %s19 = sphi 0, %s17
    %s20 = sphi 0, %s18
    %s32 = sphi 0, %s34
    %s35 = sphi 0, %s32
    %s36 = sphi 0, %s35
    %s52 = sphi 0, %s36
    %s58 = sphi 0, %s60
    %s61 = sphi 0, %s58
    %s62 = sphi 0, %s61
    %s78 = sphi 0, %s62
    %s84 = sphi 0, %s86
    %s87 = sphi 0, %s84
    %s88 = sphi 0, %s87
    %s104 = sphi 0, %s88
  $region4: #{apn_forward.1} parent=0 // loop_header_branch
    %11 = sbr.rel (%p9) target = $region8
  $region5: #{apn_forward.1} parent=0 // loop_body
    %s13 = ssub.s32 %s8, 1
    %s14 = ssub.s32 %s8, 2
    %s21 = sadd.s32 1, %s16
    %p22 = scmp.ge.s32.totalorder %s21, 1
    %s23 = scalar_select %p22, 0, %s21
    %s24 = sadd.s32 1, %s15
    %s25 = scalar_select %p22, %s24, %s15
    %p26 = scmp.ge.s32.totalorder %s25, 2
    %s27 = scalar_select %p26, 0, %s25
    %s28 = ssub.s32 %s15, %s27
    %s29 = ssub.s32 %s16, %s23
    %s30 = sor.u32 %s28, %s29
    %p31 = scmp.eq.s32.totalorder %s30, 0
    %s33 = sadd.s32 %s32, 1
    %s34 = scalar_select %p31, %s32, %s33
    %p37 = pneg %p31
    %p38 = scmp.eq.s32.totalorder %s8, 1
    %p39 = por %p37, %p38
    %p40 = scmp.ne.s32.totalorder %s32, %s35
    %p41 = scmp.eq.s32.totalorder %s8, 0
    %p42 = por %p40, %p41
    %p43 = scmp.ne.s32.totalorder %s32, %s35
    %p44 = scmp.eq.s32.totalorder %s13, 1
    %p45 = por %p43, %p44
    %p46 = scmp.ne.s32.totalorder %s35, %s36
    %p47 = scmp.eq.s32.totalorder %s13, 0
    %p48 = por %p46, %p47
    %p49 = scmp.ne.s32.totalorder %s35, %s36
    %p50 = scmp.eq.s32.totalorder %s14, 1
    %p51 = por %p49, %p50
    %p53 = scmp.ne.s32.totalorder %s36, %s52
    %p54 = scmp.eq.s32.totalorder %s14, 0
    %p55 = por %p53, %p54
    %s56 = ssub.s32 %s16, %s23
    %p57 = scmp.eq.s32.totalorder %s56, 0
    %s59 = sadd.s32 %s58, 1
    %s60 = scalar_select %p57, %s58, %s59
    %p63 = pneg %p57
    %p64 = scmp.eq.s32.totalorder %s8, 1
    %p65 = por %p63, %p64
    %p66 = scmp.ne.s32.totalorder %s58, %s61
    %p67 = scmp.eq.s32.totalorder %s8, 0
    %p68 = por %p66, %p67
    %p69 = scmp.ne.s32.totalorder %s58, %s61
    %p70 = scmp.eq.s32.totalorder %s13, 1
    %p71 = por %p69, %p70
    %p72 = scmp.ne.s32.totalorder %s61, %s62
    %p73 = scmp.eq.s32.totalorder %s13, 0
    %p74 = por %p72, %p73
    %p75 = scmp.ne.s32.totalorder %s61, %s62
    %p76 = scmp.eq.s32.totalorder %s14, 1
    %p77 = por %p75, %p76
    %p79 = scmp.ne.s32.totalorder %s62, %s78
    %p80 = scmp.eq.s32.totalorder %s14, 0
    %p81 = por %p79, %p80
    %s82 = ssub.s32 %s15, %s27
    %p83 = scmp.eq.s32.totalorder %s82, 0
    %s85 = sadd.s32 %s84, 1
    %s86 = scalar_select %p83, %s84, %s85
    %p89 = pneg %p83
    %p90 = scmp.eq.s32.totalorder %s8, 1
    %p91 = por %p89, %p90
    %p92 = scmp.ne.s32.totalorder %s84, %s87
    %p93 = scmp.eq.s32.totalorder %s8, 0
    %p94 = por %p92, %p93
    %p95 = scmp.ne.s32.totalorder %s84, %s87
    %p96 = scmp.eq.s32.totalorder %s13, 1
    %p97 = por %p95, %p96
    %p98 = scmp.ne.s32.totalorder %s87, %s88
    %p99 = scmp.eq.s32.totalorder %s13, 0
    %p100 = por %p98, %p99
    %p101 = scmp.ne.s32.totalorder %s87, %s88
    %p102 = scmp.eq.s32.totalorder %s14, 1
    %p103 = por %p101, %p102
    %p105 = scmp.ne.s32.totalorder %s88, %s104
    %p106 = scmp.eq.s32.totalorder %s14, 0
    %p107 = por %p105, %p106
    %p108 = scmp.le.s32.totalorder 1, %s8
    %p109 = scmp.lt.s32.totalorder %s8, 3
    %p110 = pnand %p108, %p109
    %p111 = pneg %p110
    // Predicated region
    $region9: #{apn_forward.1} parent=5 // pred_check
      _
    $region10: #{apn_forward.1} parent=5 // pred_check_branch
      %113 = sbr.rel (%p110) target = $region12
    $region11: #{apn_forward.1} parent=5 // pred_region
      %s114 = ssub.s32 %s8, 1
      // Predicated region
      $region13: #{apn_forward.1} parent=11 // pred_check
        %p115 = pneg %p74
      $region14: #{apn_forward.1} parent=11 // pred_check_branch
        %117 = sbr.rel (%p115) target = $region16
      $region15: #{apn_forward.1} parent=11 // pred_region
        %p118 = scmp.lt.s32.totalorder %s18, 0
        %s119 = scalar_select %p118, %s18, 0
        %s120 = smul.addr %s119, 8
        %s121 = scalar_lea.vmem %s1, %s120
      $region16: #{apn_forward.1} parent=11 // pred_fallthru
        _
    $region12: #{apn_forward.1} parent=5 // pred_fallthru
      _
    %p122 = scmp.lt.s32.totalorder %s8, 2
    // Predicated region
    $region17: #{apn_forward.1} parent=5 // pred_check
      %p123 = pneg %p122
    $region18: #{apn_forward.1} parent=5 // pred_check_branch
      %125 = sbr.rel (%p123) target = $region20
    $region19: #{apn_forward.1} parent=5 // pred_region
      // Predicated region
      $region21: #{apn_forward.1} parent=19 // pred_check
        %p126 = pneg %p42
      $region22: #{apn_forward.1} parent=19 // pred_check_branch
        %128 = sbr.rel (%p126) target = $region24
      $region23: #{apn_forward.1} parent=19 // pred_region
        %p129 = scmp.lt.s32.totalorder %s15, 1
        %s130 = scalar_select %p129, %s15, 1
        %p131 = scmp.lt.s32.totalorder %s16, 0
        %s132 = scalar_select %p131, %s16, 0
        %s133 = sadd.s32 %s132, %s130
        %s134 = smul.addr %s133, 8
        %s135 = scalar_lea.vmem %s0, %s134
      $region24: #{apn_forward.1} parent=19 // pred_fallthru
        _
    $region20: #{apn_forward.1} parent=5 // pred_fallthru
      _
    %p136 = scmp.le.s32.totalorder 1, %s8
    %p137 = scmp.lt.s32.totalorder %s8, 3
    %p138 = pnand %p136, %p137
    %p139 = pneg %p138
    // Predicated region
    $region25: #{apn_forward.1} parent=5 // pred_check
      _
    $region26: #{apn_forward.1} parent=5 // pred_check_branch
      %141 = sbr.rel (%p138) target = $region28
    $region27: #{apn_forward.1} parent=5 // pred_region
      %s142 = ssub.s32 %s8, 1
      %p143 = scmp.lt.s32.totalorder %s17, 1
      %s144 = scalar_select %p143, %s17, 1
      %p145 = scmp.lt.s32.totalorder %s18, 0
      %s146 = scalar_select %p145, %s18, 0
      %s147 = sadd.s32 %s146, %s144
      %s148 = smul.addr %s147, 8
      %s149 = scalar_lea.vmem %s0, %s148
      %p150 = pneg %p48
      %p151 = pneg %p45
      %p152 = scmp.lt.s32.totalorder %s18, 0
      %s153 = scalar_select %p152, %s18, 0
      %s154 = smul.addr %s153, 8
      %s155 = scalar_lea.vmem %s1, %s154
      %p156 = pneg %p74
      %p157 = pneg %p71
      %p158 = pneg %p100
      %p159 = pneg %p97
      %p160 = scmp.lt.s32.totalorder %s17, 1
      %s161 = scalar_select %p160, %s17, 1
      %s162 = smul.addr %s161, 8
      %s163 = scalar_lea.vmem %s2, %s162
      %p164 = scmp.lt.s32.totalorder %s17, 1
      %s165 = scalar_select %p164, %s17, 1
      %p166 = scmp.lt.s32.totalorder %s18, 0
      %s167 = scalar_select %p166, %s18, 0
      %s168 = sadd.s32 %s167, %s165
      %s169 = smul.addr %s168, 8
      %s170 = scalar_lea.vmem %s0, %s169
      %p171 = scmp.lt.s32.totalorder %s18, 0
      %s172 = scalar_select %p171, %s18, 0
      %s173 = smul.addr %s172, 8
      %s174 = scalar_lea.vmem %s1, %s173
      %p175 = scmp.lt.s32.totalorder %s17, 1
      %s176 = scalar_select %p175, %s17, 1
      %s177 = smul.addr %s176, 8
      %s178 = scalar_lea.vmem %s2, %s177
      %p179 = scmp.eq.s32.totalorder %s18, 0
      // Predicated region
      $region29: #{apn_forward.1} parent=27 // pred_check
        %p180 = pneg %p179
      $region30: #{apn_forward.1} parent=27 // pred_check_branch
        %182 = sbr.rel (%p180) target = $region32
      $region31: #{apn_forward.1} parent=27 // pred_region
        %vm183 = vcmask 130048
        %184 = vst.msk [vmem:[#allocation2] sm:$0xff] %vm183, 0.0
      $region32: #{apn_forward.1} parent=27 // pred_fallthru
        _
      %v185 = vld [vmem:[#allocation2] sm:$0xff]
      %v186 = vld [vmem:[%s170] sm:$0xff]
      %v187 = vld [vmem:[%s174] sm:$0xff]
      %v188 = vld [vmem:[%s174 + $0x8] sm:$0xff]
      %vm189 = vcmask 523264
      %v191 = vsel %vm189, %v186, 0
      %v194 = vsel %vm189, %v187, 0
      %v197 = vsel %vm189, %v188, 0
      %199 = vmatprep.subr.mxu0 0.0
      %200 = vmatpush1.xpose.msra.mxu0 %v194
      %201 = vmatprep.subr.mxu0 0.0
      %202 = vmatpush1.xpose.msra.mxu0 %v197
      %203 = vmatprep.subr.mxu0 0.0
      %204 = vmatpush1.xpose.msra.mxu0 0.0
      %205 = vmatprep.subr.mxu0 0.0
      %206 = vmatpush1.xpose.msra.mxu0 0.0
      %207 = vmatprep.subr.mxu0 0.0
      %208 = vmatpush1.xpose.msra.mxu0 0.0
      %209 = vmatprep.subr.mxu0 0.0
      %210 = vmatpush1.xpose.msra.mxu0 0.0
      %211 = vmatprep.subr.mxu0 0.0
      %212 = vmatpush1.xpose.msra.mxu0 0.0
      %213 = vmatprep.subr.mxu0 0.0
      %214 = vmatpush1.xpose.msra.mxu0 0.0
      %215 = vmatprep.subr.mxu0 0.0
      %216 = vmatpush1.xpose.msra.mxu0 0.0
      %217 = vmatprep.subr.mxu0 0.0
      %218 = vmatpush1.xpose.msra.mxu0 0.0
      %219 = vmatprep.subr.mxu0 0.0
      %220 = vmatpush1.xpose.msra.mxu0 0.0
      %221 = vmatprep.subr.mxu0 0.0
      %222 = vmatpush1.xpose.msra.mxu0 0.0
      %223 = vmatprep.subr.mxu0 0.0
      %224 = vmatpush1.xpose.msra.mxu0 0.0
      %225 = vmatprep.subr.mxu0 0.0
      %226 = vmatpush1.xpose.msra.mxu0 0.0
      %227 = vmatprep.subr.mxu0 0.0
      %228 = vmatpush1.xpose.msra.mxu0 0.0
      %229 = vmatprep.subr.mxu0 0.0
      %230 = vmatpush1.xpose.msra.mxu0 0.0
      %231 = vmatprep.subr.mxu0 0.0
      %232 = vmatpush1.xpose.msra.mxu0 0.0
      %233 = vmatprep.subr.mxu0 0.0
      %234 = vmatpush1.xpose.msra.mxu0 0.0
      %235 = vmatprep.subr.mxu0 0.0
      %236 = vmatpush1.xpose.msra.mxu0 0.0
      %237 = vmatprep.subr.mxu0 0.0
      %238 = vmatpush1.xpose.msra.mxu0 0.0
      %239 = vmatprep.subr.mxu0 0.0
      %240 = vmatpush1.xpose.msra.mxu0 0.0
      %241 = vmatprep.subr.mxu0 0.0
      %242 = vmatpush1.xpose.msra.mxu0 0.0
      %243 = vmatprep.subr.mxu0 0.0
      %244 = vmatpush1.xpose.msra.mxu0 0.0
      %245 = vmatprep.subr.mxu0 0.0
      %246 = vmatpush1.xpose.msra.mxu0 0.0
      %247 = vmatprep.subr.mxu0 0.0
      %248 = vmatpush1.xpose.msra.mxu0 0.0
      %249 = vmatprep.subr.mxu0 0.0
      %250 = vmatpush1.xpose.msra.mxu0 0.0
      %251 = vmatprep.subr.mxu0 0.0
      %252 = vmatpush1.xpose.msra.mxu0 0.0
      %253 = vmatprep.subr.mxu0 0.0
      %254 = vmatpush1.xpose.msra.mxu0 0.0
      %255 = vmatprep.subr.mxu0 0.0
      %256 = vmatpush1.xpose.msra.mxu0 0.0
      %257 = vmatprep.subr.mxu0 0.0
      %258 = vmatpush1.xpose.msra.mxu0 0.0
      %259 = vmatprep.subr.mxu0 0.0
      %260 = vmatpush1.xpose.msra.mxu0 0.0
      %261 = vmatprep.subr.mxu0 0.0
      %262 = vmatpush1.xpose.msra.mxu0 0.0
      %263 = vmatprep.mubr.f32.mxu0 0.0
      %264 = vmatmul.mubr.f32.gmra.mrb[0].mxu0 %v191
      %v265 = vpop.f32.mrb[0].mxu0
      %v266 = vadd.f32 0.0, %v265
      %v267 = vpop.f32.mrb[0].mxu0
      %268 = vdwg.mxu0
      %v269 = vadd.f32 %v185, %v266
      %vm270 = vcmask 130048
      %271 = vst.msk [vmem:[#allocation2] sm:$0xff] %vm270, %v269
      // Predicated region
      $region33: #{apn_forward.1} parent=27 // pred_check
        %p272 = pneg %p179
      $region34: #{apn_forward.1} parent=27 // pred_check_branch
        %274 = sbr.rel (%p272) target = $region36
      $region35: #{apn_forward.1} parent=27 // pred_region
        %v275 = vld [vmem:[#allocation2] sm:$0xff]
        %276 = vst.msk [vmem:[%s178] sm:$0xff] %vm270, %v275
      $region36: #{apn_forward.1} parent=27 // pred_fallthru
        _
      %p277 = scmp.lt.s32.totalorder %s17, 1
      %s278 = scalar_select %p277, %s17, 1
      %s279 = smul.addr %s278, 8
      %s280 = scalar_lea.vmem %s2, %s279
      // Predicated region
      $region37: #{apn_forward.1} parent=27 // pred_check
        %p281 = pneg %p97
      $region38: #{apn_forward.1} parent=27 // pred_check_branch
        %283 = sbr.rel (%p281) target = $region40
      $region39: #{apn_forward.1} parent=27 // pred_region
        _
      $region40: #{apn_forward.1} parent=27 // pred_fallthru
        _
    $region28: #{apn_forward.1} parent=5 // pred_fallthru
      _
    %p284 = scmp.le.s32.totalorder 2, %s8
    // Predicated region
    $region41: #{apn_forward.1} parent=5 // pred_check
      %p285 = pneg %p284
    $region42: #{apn_forward.1} parent=5 // pred_check_branch
      %287 = sbr.rel (%p285) target = $region44
    $region43: #{apn_forward.1} parent=5 // pred_region
      %s288 = ssub.s32 %s8, 2
      // Predicated region
      $region45: #{apn_forward.1} parent=43 // pred_check
        %p289 = pneg %p103
      $region46: #{apn_forward.1} parent=43 // pred_check_branch
        %291 = sbr.rel (%p289) target = $region48
      $region47: #{apn_forward.1} parent=43 // pred_region
        %p292 = scmp.lt.s32.totalorder %s19, 1
        %s293 = scalar_select %p292, %s19, 1
        %s294 = smul.addr %s293, 8
        %s295 = scalar_lea.vmem %s2, %s294
      $region48: #{apn_forward.1} parent=43 // pred_fallthru
        _
    $region44: #{apn_forward.1} parent=5 // pred_fallthru
      _
  $region6: #{apn_forward.1} parent=0 // loop_footer
    %s12 = sadd.s32 1, %s8
  $region7: #{apn_forward.1} parent=0 // loop_footer_branch
    %7 = sbr.rel target = $region3
  $region8: #{apn_forward.1} parent=0 // loop_exit
    _

</llo_original>
